<compile_context>
chip_gen: v6e
topology: v6e:2x2x1
jax: 0.10.0
libtpu: 0.0.40
codegen_flags: <defaults>
</compile_context>

<pallas_src>
import functools

import jax
import jax.numpy as jnp
import numpy as np
from jax.experimental import pallas as pl
from jax.experimental.pallas import tpu as pltpu


def graph_attn_kernel(x_ref, cw_ref, cb_ref, pw_ref, pb_ref, c_ref, *, n_valid):
    # x_ref:  (1, C_in, Np) bf16    full (padded) spatial extent for this batch elem
    # cw_ref: (D, C_in) bf16  = W_general @ theta_w ; cb_ref: (D, 1) f32 = W_general @ theta_b
    # pw_ref: (D, C_in) bf16  (phi weight)          ; pb_ref: (D, 1) f32 (phi bias)
    # c_ref:  (1, Np, TN) f32       column tile of the graph C
    # n_valid: static count of real (unpadded) rows; rows >= n_valid are masked out of
    #          the softmax so zero-padding never pollutes the denominator.
    n_pad = c_ref.shape[1]
    n_tile = c_ref.shape[2]
    c0 = pl.multiple_of(pl.program_id(1) * n_tile, n_tile)

    # h_t^T for ALL rows of f: (D, Np), lane-dense.  Tiny C_in-deep matmul, recomputed
    # per column step so both grid axes stay "parallel" (megacore / 2-TC shardable).
    h_t = jnp.dot(pw_ref[...], x_ref[0],
                  preferred_element_type=jnp.float32) + pb_ref[...]          # (D, Np)

    # g = W_general @ (theta_w @ x_cols + theta_b) == cw @ x_cols + cb (folded on host)
    x_cols = x_ref[0, :, pl.ds(c0, n_tile)]                                  # (C_in, TN)
    g = jnp.dot(cw_ref[...], x_cols,
                preferred_element_type=jnp.float32) + cb_ref[...]            # (D, TN)

    # f[m, n] = h_t[:, m] . g[:, n] — contract D directly (no materialized .T).
    # Dominant MXU op runs bf16 x bf16 with f32 accumulation.
    f = jax.lax.dot_general(h_t.astype(jnp.bfloat16), g.astype(jnp.bfloat16),
                            (((0,), (0,)), ((), ())),
                            preferred_element_type=jnp.float32)              # (Np, TN)

    # Mask zero-padded rows (static branch — only emitted when Np > N).
    if n_valid < n_pad:
        row = jax.lax.broadcasted_iota(jnp.int32, f.shape, 0)
        f = jnp.where(row < n_valid, f, jnp.float32(-1e30))

    # softmax over rows (torch dim=-2); each output column normalizes independently,
    # so column tiling needs no online softmax.  Exact reciprocal keeps column sums
    # at 1 to f32 rounding (EUP work, off the critical path of a mem-bound kernel).
    f = f - jnp.max(f, axis=0, keepdims=True)
    e = jnp.exp(f)
    denom = jnp.sum(e, axis=0, keepdims=True)
    c_ref[0] = e * pl.reciprocal(denom, approx=False)


def _vmem_capacity_bytes():
    try:
        return int(pltpu.get_tpu_info().vmem_capacity_bytes)
    except Exception:
        return 64 * 1024 * 1024          # conservative fallback: v7x per-TC VMEM


def _pick_col_tile(n_pad, c_in, d, vmem_cap):
    """Largest lane-dense column tile TN (divisor of n_pad) whose full per-step VMEM
    footprint fits in ~half of chip VMEM.  Prefers 256-granular tiles (v6e/v7x MXU
    output width) with >= 2 column tiles for pipelining; 128-granular fallback
    (matches v5e's MXU); single full-width tile only when nothing smaller divides."""
    budget = vmem_cap // 2                              # headroom for Mosaic scratch
    fixed = 2 * (2 * c_in * n_pad) + 4 * d * n_pad      # x dbl-buf (bf16) + h_t (f32)
    per_tn = 16 * n_pad                                 # out dbl-buf + f/e intermediates
    tn_cap = (budget - fixed) // per_tn if budget > fixed else 0
    tn_cap = max(128, tn_cap)
    for mult in (256, 128):
        cands = [t for t in range(mult, n_pad, mult) if n_pad % t == 0 and t <= tn_cap]
        if cands:
            return max(cands)
    return n_pad


def individual_graph_general(x_nchw, theta_w, theta_b, phi_w, phi_b, gen_w):
    """x_nchw: (B, C_in, T, P) float32.  Returns C: (B, N, N) float32, N = T * P."""
    B, C_in, T, P = x_nchw.shape
    N = T * P
    D = theta_w.shape[0]

    # Fold W_general into theta once on the host (exact, f32): removes one MXU op/step.
    cw = (gen_w @ theta_w).astype(jnp.bfloat16)                   # (D, C_in)
    cb = (gen_w @ theta_b).reshape(D, 1).astype(jnp.float32)      # (D, 1)
    pw = phi_w.astype(jnp.bfloat16)
    pb = phi_b.reshape(D, 1).astype(jnp.float32)

    # Channels-first, spatial-flattened layout (pure reshape of NCHW, no HBM transpose).
    # Pad N up to lane width so every tile is lane-dense even for odd T*P; padded rows
    # are masked inside the kernel, padded rows/cols sliced off below.
    n_pad = max(128, ((N + 127) // 128) * 128)
    x_flat = x_nchw.reshape(B, C_in, N).astype(jnp.bfloat16)
    if n_pad != N:
        x_flat = jnp.pad(x_flat, ((0, 0), (0, 0), (0, n_pad - N)))

    vmem_cap = _vmem_capacity_bytes()
    TN = _pick_col_tile(n_pad, C_in, D, vmem_cap)
    n_col = n_pad // TN
    grid = (B, n_col)
    vmem_limit = int(max(32 * 1024 * 1024, min(vmem_cap * 3 // 4, 112 * 1024 * 1024)))

    kernel = functools.partial(graph_attn_kernel, n_valid=N)

    out = pl.pallas_call(
        kernel,
        # Output kept f32 to match the module; switch to bf16 here (and cast at the
        # store) to halve the dominant HBM writeback if downstream tolerates it.
        out_shape=jax.ShapeDtypeStruct((B, n_pad, n_pad), jnp.float32),
        grid_spec=pltpu.PrefetchScalarGridSpec(
            num_scalar_prefetch=0,
            grid=grid,
            in_specs=[
                # x block index stays (b, 0, 0) across column steps -> not re-DMA'd.
                pl.BlockSpec((1, C_in, n_pad), lambda b, n: (b, 0, 0)),
                pl.BlockSpec((D, C_in), lambda b, n: (0, 0)),
                pl.BlockSpec((D, 1), lambda b, n: (0, 0)),
                pl.BlockSpec((D, C_in), lambda b, n: (0, 0)),
                pl.BlockSpec((D, 1), lambda b, n: (0, 0)),
            ],
            out_specs=pl.BlockSpec((1, n_pad, TN), lambda b, n: (b, 0, n)),
        ),
        compiler_params=pltpu.CompilerParams(
            dimension_semantics=("parallel", "parallel"),
            vmem_limit_bytes=vmem_limit,
        ),
    )(x_flat, cw, cb, pw, pb)

    if n_pad != N:
        out = out[:, :N, :N]
    return out


def reference_jax(x, theta_w, theta_b, phi_w, phi_b, gen_w):
    """Pure-JAX mirror of the PyTorch forward (f32, highest matmul precision)."""
    B, C_in, T, P = x.shape
    N = T * P
    hp = jax.lax.Precision.HIGHEST
    hs = jnp.einsum('oc,bctp->botp', theta_w, x, precision=hp) + theta_b[None, :, None, None]
    ht = jnp.einsum('oc,bctp->botp', phi_w, x, precision=hp) + phi_b[None, :, None, None]
    hs = hs.reshape(B, -1, N)                                    # (B, D, N)
    ht = ht.reshape(B, -1, N)                                    # (B, D, N)
    f = jnp.einsum('dk,bkn->bdn', gen_w, hs, precision=hp)       # (B, D, N)
    f = jnp.einsum('bdm,bdn->bmn', ht, f, precision=hp)          # (B, N, N)
    return jax.nn.softmax(f, axis=-2)


def _check(x, theta_w, theta_b, phi_w, phi_b, gen_w):
    C_kernel = individual_graph_general(x, theta_w, theta_b, phi_w, phi_b, gen_w)
    C_kernel = jax.block_until_ready(C_kernel)
    B, _, T, P = x.shape
    N = T * P
    assert C_kernel.shape == (B, N, N)

    # Reference on the same bf16-rounded x / conv weights the kernel sees; remaining
    # differences are the bf16 MXU path (intentional, per perf review) vs. f32 math.
    xr = x.astype(jnp.bfloat16).astype(jnp.float32)
    twr = theta_w.astype(jnp.bfloat16).astype(jnp.float32)
    pwr = phi_w.astype(jnp.bfloat16).astype(jnp.float32)
    C_ref = reference_jax(xr, twr, theta_b, pwr, phi_b, gen_w)

    np.testing.assert_allclose(np.asarray(C_kernel), np.asarray(C_ref),
                               rtol=3e-2, atol=3e-4)
    # Columns (dim=-2 softmax) sum to 1 (exact reciprocal -> f32 rounding only).
    np.testing.assert_allclose(np.asarray(C_kernel).sum(axis=-2),
                               np.ones((B, N)), rtol=0, atol=5e-4)


if __name__ == "__main__":
    key = jax.random.PRNGKey(0)
    k_x, k_tw, k_tb, k_pw, k_pb, k_gw, k_x2 = jax.random.split(key, 7)

    # Case 1: lane-aligned N = 256 (T=32, P=8) exercising column tiling (TN=128,
    # grid = (B, 2)) with lane-dense 128-wide output stores.
    B, C_in, T, P = 2, 16, 32, 8
    D = C_in          # view(B, feature_dim, -1) implies out_channels == in_channels
    x = jax.random.normal(k_x, (B, C_in, T, P), dtype=jnp.float32)

    # The module's init_weights zeroes everything (trivially uniform output); use
    # random parameters so the kernel math is actually exercised.
    theta_w = jax.random.normal(k_tw, (D, C_in), dtype=jnp.float32) * 0.1
    theta_b = jax.random.normal(k_tb, (D,), dtype=jnp.float32) * 0.1
    phi_w = jax.random.normal(k_pw, (D, C_in), dtype=jnp.float32) * 0.1
    phi_b = jax.random.normal(k_pb, (D,), dtype=jnp.float32) * 0.1
    gen_w = jax.random.normal(k_gw, (D, D), dtype=jnp.float32) * 0.1

    _check(x, theta_w, theta_b, phi_w, phi_b, gen_w)

    # Case 2: N = 120 (T=10, P=12, like the module's "12 persons" use case) — not a
    # multiple of 128 — exercising the pad-to-lane-width + in-kernel row-mask path.
    x2 = jax.random.normal(k_x2, (1, C_in, 10, 12), dtype=jnp.float32)
    _check(x2, theta_w, theta_b, phi_w, phi_b, gen_w)

    print("KERNEL_OK")
</pallas_src>

<mosaic_0001>
module attributes {stable_mosaic.version = 11 : i64} {
  func.func @graph_attn_kernel(%arg0: i32, %arg1: i32, %arg2: memref<1x16x256xbf16, #tpu.memory_space<vmem>>, %arg3: memref<16x16xbf16, #tpu.memory_space<vmem>>, %arg4: memref<16x1xf32, #tpu.memory_space<vmem>>, %arg5: memref<16x16xbf16, #tpu.memory_space<vmem>>, %arg6: memref<16x1xf32, #tpu.memory_space<vmem>>, %arg7: memref<1x256x128xf32, #tpu.memory_space<vmem>>) attributes {dimension_semantics = [#tpu.dimension_semantics<parallel>, #tpu.dimension_semantics<parallel>], iteration_bounds = array<i64: 2, 2>, scalar_prefetch = 0 : i64, scratch_operands = 0 : i64, tpu.core_type = #tpu.core_type<tc>, window_params = [{transform_indices = @transform_0, window_bounds = array<i64: 1, 16, 256>}, {pipeline_mode = #tpu.pipeline_mode<synchronous>, transform_indices = @transform_1, window_bounds = array<i64: 16, 16>}, {pipeline_mode = #tpu.pipeline_mode<synchronous>, transform_indices = @transform_2, window_bounds = array<i64: 16, 1>}, {pipeline_mode = #tpu.pipeline_mode<synchronous>, transform_indices = @transform_3, window_bounds = array<i64: 16, 16>}, {pipeline_mode = #tpu.pipeline_mode<synchronous>, transform_indices = @transform_4, window_bounds = array<i64: 16, 1>}, {transform_indices = @transform_5, window_bounds = array<i64: 1, 256, 128>}]} {
    %c128_i32 = arith.constant 128 : i32
    %0 = arith.muli %arg1, %c128_i32 : i32
    %1 = tpu.assume_multiple %0, 128 : i32
    %c0 = arith.constant 0 : index
    %c0_0 = arith.constant 0 : index
    %2 = vector.load %arg5[%c0, %c0_0] : memref<16x16xbf16, #tpu.memory_space<vmem>>, vector<16x16xbf16>
    %c0_1 = arith.constant 0 : index
    %c0_2 = arith.constant 0 : index
    %c0_3 = arith.constant 0 : index
    %3 = vector.load %arg2[%c0_1, %c0_2, %c0_3] : memref<1x16x256xbf16, #tpu.memory_space<vmem>>, vector<1x16x256xbf16>
    %4 = vector.shape_cast %3 : vector<1x16x256xbf16> to vector<16x256xbf16>
    %cst = arith.constant dense<0.000000e+00> : vector<16x256xf32>
    %5 = tpu.matmul %2, %4, %cst {dimension_numbers = #tpu.dot_dimension_numbers<[1], [0], [0], [1], [0, 0, 1, 1], [], []>} : vector<16x16xbf16>, vector<16x256xbf16>, vector<16x256xf32> -> vector<16x256xf32>
    %c0_4 = arith.constant 0 : index
    %c0_5 = arith.constant 0 : index
    %6 = vector.load %arg6[%c0_4, %c0_5] : memref<16x1xf32, #tpu.memory_space<vmem>>, vector<16x1xf32>
    %7 = vector.broadcast %6 : vector<16x1xf32> to vector<16x256xf32>
    %8 = arith.addf %5, %7 : vector<16x256xf32>
    %c0_6 = arith.constant 0 : index
    %c0_7 = arith.constant 0 : index
    %9 = arith.index_cast %1 : i32 to index
    %10 = vector.load %arg2[%c0_6, %c0_7, %9] : memref<1x16x256xbf16, #tpu.memory_space<vmem>>, vector<1x16x128xbf16>
    %11 = vector.shape_cast %10 : vector<1x16x128xbf16> to vector<16x128xbf16>
    %c0_8 = arith.constant 0 : index
    %c0_9 = arith.constant 0 : index
    %12 = vector.load %arg3[%c0_8, %c0_9] : memref<16x16xbf16, #tpu.memory_space<vmem>>, vector<16x16xbf16>
    %cst_10 = arith.constant dense<0.000000e+00> : vector<16x128xf32>
    %13 = tpu.matmul %12, %11, %cst_10 {dimension_numbers = #tpu.dot_dimension_numbers<[1], [0], [0], [1], [0, 0, 1, 1], [], []>} : vector<16x16xbf16>, vector<16x128xbf16>, vector<16x128xf32> -> vector<16x128xf32>
    %c0_11 = arith.constant 0 : index
    %c0_12 = arith.constant 0 : index
    %14 = vector.load %arg4[%c0_11, %c0_12] : memref<16x1xf32, #tpu.memory_space<vmem>>, vector<16x1xf32>
    %15 = vector.broadcast %14 : vector<16x1xf32> to vector<16x128xf32>
    %16 = arith.addf %13, %15 : vector<16x128xf32>
    %17 = arith.truncf %8 : vector<16x256xf32> to vector<16x256xbf16>
    %18 = arith.truncf %16 : vector<16x128xf32> to vector<16x128xbf16>
    %cst_13 = arith.constant dense<0.000000e+00> : vector<256x128xf32>
    %19 = tpu.matmul %17, %18, %cst_13 {dimension_numbers = #tpu.dot_dimension_numbers<[0], [0], [1], [1], [0, 1, 1, 1], [], []>} : vector<16x256xbf16>, vector<16x128xbf16>, vector<256x128xf32> -> vector<256x128xf32>
    %cst_14 = arith.constant dense<0xFF800000> : vector<128xf32>
    %20 = vector.multi_reduction <maximumf>, %19, %cst_14 [0] : vector<256x128xf32> to vector<128xf32>
    %21 = vector.shape_cast %20 : vector<128xf32> to vector<1x128xf32>
    %22 = vector.broadcast %21 : vector<1x128xf32> to vector<256x128xf32>
    %23 = arith.subf %19, %22 : vector<256x128xf32>
    %24 = math.exp %23 : vector<256x128xf32>
    %cst_15 = arith.constant dense<0.000000e+00> : vector<128xf32>
    %25 = vector.multi_reduction <add>, %24, %cst_15 [0] : vector<256x128xf32> to vector<128xf32>
    %26 = vector.shape_cast %25 : vector<128xf32> to vector<1x128xf32>
    %27 = tpu.reciprocal %26 : vector<1x128xf32> -> vector<1x128xf32>
    %28 = vector.broadcast %27 : vector<1x128xf32> to vector<256x128xf32>
    %29 = arith.mulf %24, %28 : vector<256x128xf32>
    %c0_16 = arith.constant 0 : index
    %c0_17 = arith.constant 0 : index
    %c0_18 = arith.constant 0 : index
    %30 = vector.load %arg7[%c0_16, %c0_17, %c0_18] : memref<1x256x128xf32, #tpu.memory_space<vmem>>, vector<1x256x128xf32>
    %31 = vector.shape_cast %30 : vector<1x256x128xf32> to vector<256x128xf32>
    %32 = vector.shape_cast %29 : vector<256x128xf32> to vector<1x256x128xf32>
    tpu.vector_store %arg7[%c0_16, %c0_17, %c0_18], %32 {strides = array<i32>} : memref<1x256x128xf32, #tpu.memory_space<vmem>>, vector<1x256x128xf32>,
    return
  }
  func.func @transform_0(%arg0: i32, %arg1: i32) -> (i32, i32, i32) {
    %c0_i32 = arith.constant 0 : i32
    %c0_i32_0 = arith.constant 0 : i32
    %c0_i32_1 = arith.constant 0 : i32
    return %arg0, %c0_i32, %c0_i32_0 : i32, i32, i32
  }
  func.func @transform_1(%arg0: i32, %arg1: i32) -> (i32, i32) {
    %c0_i32 = arith.constant 0 : i32
    %c0_i32_0 = arith.constant 0 : i32
    %c0_i32_1 = arith.constant 0 : i32
    return %c0_i32, %c0_i32_0 : i32, i32
  }
  func.func @transform_2(%arg0: i32, %arg1: i32) -> (i32, i32) {
    %c0_i32 = arith.constant 0 : i32
    %c0_i32_0 = arith.constant 0 : i32
    %c0_i32_1 = arith.constant 0 : i32
    return %c0_i32, %c0_i32_0 : i32, i32
  }
  func.func @transform_3(%arg0: i32, %arg1: i32) -> (i32, i32) {
    %c0_i32 = arith.constant 0 : i32
    %c0_i32_0 = arith.constant 0 : i32
    %c0_i32_1 = arith.constant 0 : i32
    return %c0_i32, %c0_i32_0 : i32, i32
  }
  func.func @transform_4(%arg0: i32, %arg1: i32) -> (i32, i32) {
    %c0_i32 = arith.constant 0 : i32
    %c0_i32_0 = arith.constant 0 : i32
    %c0_i32_1 = arith.constant 0 : i32
    return %c0_i32, %c0_i32_0 : i32, i32
  }
  func.func @transform_5(%arg0: i32, %arg1: i32) -> (i32, i32, i32) {
    %c0_i32 = arith.constant 0 : i32
    %c0_i32_0 = arith.constant 0 : i32
    return %arg0, %c0_i32, %arg1 : i32, i32, i32
  }
}

</mosaic_0001>

<llo_original>
// kernel: tpu_custom_call.1
$region0: #{tpu_custom_call.1}
  #allocation0 [shape = 'u32[]', space=smem, size = 0x4, offset = 0x4, fixed_abs, tag = 'smem constant byte address 0x4 - core index']
  #allocation1 [shape = 'u32[144,128]{1,0:T(1,128)}', space=vmem, size = 0x12000, scoped, tag = 'internal scratch']
  %s0 = inlined_call_operand.vmem [shape: bf16[2,16,256], index: 0, kind: input, shape index: {}]
  %s1 = inlined_call_operand.hbm [shape: bf16[16,16], index: 1, kind: input, shape index: {}]
  %s2 = inlined_call_operand.vmem [shape: f32[16,1], index: 2, kind: input, shape index: {}]
  %s3 = inlined_call_operand.hbm [shape: bf16[16,16], index: 3, kind: input, shape index: {}]
  %s4 = inlined_call_operand.vmem [shape: f32[16,1], index: 4, kind: input, shape index: {}]
  %s5 = inlined_call_operand.hbm [shape: f32[2,256,256], index: 5, kind: output, shape index: {}]
  %s6 = sld [smem:[#allocation0]]
  $region61: #{tpu_custom_call.1} parent=0
    _
  %s8 = ssub.s32 1, %s6
  %s9 = scalar_select 0, %s8, %s6
  $region1: #{tpu_custom_call.1} parent=0
    #allocation2 [shape = 'u8[4096]{0}', space=vmem, size = 0x1000, scoped, tag = 'input window, operand 1, single buffered']
    #allocation3 [shape = 's32[2]{0}', space=sflag, size = 0x8, scoped, tag = 'scoped memory for tpu_custom_call.1']
    #allocation4 [shape = 's32[2]{0}', space=sflag, size = 0x8, scoped, tag = 'scoped memory for tpu_custom_call.1']
    #allocation5 [shape = 'u8[4096]{0}', space=vmem, size = 0x1000, scoped, tag = 'input window, operand 3, single buffered']
    #allocation6 [shape = 's32[1]{0}', space=sflag, size = 0x4, scoped, tag = 'scoped memory for tpu_custom_call.1']
    #allocation7 [shape = 'u8[262144]{0}', space=vmem, size = 0x40000, scoped, tag = 'output window, operand 0']
    %10 = vsyncpa [#allocation3], 0
    %11 = vsyncpa [#allocation6], 0
    %12 = vsyncpa [#allocation4], 0
    %s13 = scalar_lea.sflag [#allocation4], 1
    %14 = vsyncpa %s13, 0
    loop: start=0, step=1, limit=6
    $region2: #{tpu_custom_call.1} parent=1 // loop_pre_header
      _
    $region3: #{tpu_custom_call.1} parent=1 // loop_header
      %s16 = sphi 0, %s20
      %p17 = scmp.ge.s32.totalorder %s16, 6
      %s23 = sphi 0, %s35
      %s24 = sphi 0, %s31
      %s25 = sphi 0, %s23
      %s26 = sphi 0, %s24
      %s27 = sphi 0, %s25
      %s28 = sphi 0, %s26
      %s38 = sphi 0, %s40
      %s41 = sphi 0, %s38
      %s42 = sphi 0, %s41
      %s58 = sphi 0, %s42
      %s62 = sphi 0, %s62
      %s64 = sphi 0, %s62
      %s65 = sphi 0, %s64
      %s79 = sphi 0, %s65
      %s83 = sphi 0, %s83
      %s85 = sphi 0, %s83
      %s86 = sphi 0, %s85
      %s100 = sphi 0, %s86
      %s104 = sphi 0, %s104
      %s106 = sphi 0, %s104
      %s107 = sphi 0, %s106
      %s121 = sphi 0, %s107
      %s125 = sphi 0, %s125
      %s127 = sphi 0, %s125
      %s128 = sphi 0, %s127
      %s142 = sphi 0, %s128
      %s150 = sphi 0, %s152
      %s153 = sphi 0, %s150
      %s154 = sphi 0, %s153
      %s170 = sphi 0, %s154
    $region4: #{tpu_custom_call.1} parent=1 // loop_header_branch
      %19 = sbr.rel (%p17) target = $region8
    $region5: #{tpu_custom_call.1} parent=1 // loop_body
      %s21 = ssub.s32 %s16, 1
      %s22 = ssub.s32 %s16, 2
      %s29 = sadd.s32 1, %s24
      %p30 = scmp.ge.s32.totalorder %s29, 2
      %s31 = scalar_select %p30, 0, %s29
      %s32 = sadd.s32 1, %s23
      %s33 = scalar_select %p30, %s32, %s23
      %p34 = scmp.ge.s32.totalorder %s33, 2
      %s35 = scalar_select %p34, 0, %s33
      %s36 = ssub.s32 %s23, %s35
      %p37 = scmp.eq.s32.totalorder %s36, 0
      %s39 = sadd.s32 %s38, 1
      %s40 = scalar_select %p37, %s38, %s39
      %p43 = pneg %p37
      %p44 = scmp.eq.s32.totalorder %s16, 3
      %p45 = por %p43, %p44
      %p46 = scmp.ne.s32.totalorder %s38, %s41
      %p47 = scmp.eq.s32.totalorder %s16, 0
      %p48 = por %p46, %p47
      %p49 = scmp.ne.s32.totalorder %s38, %s41
      %p50 = scmp.eq.s32.totalorder %s21, 3
      %p51 = por %p49, %p50
      %p52 = scmp.ne.s32.totalorder %s41, %s42
      %p53 = scmp.eq.s32.totalorder %s21, 0
      %p54 = por %p52, %p53
      %p55 = scmp.ne.s32.totalorder %s41, %s42
      %p56 = scmp.eq.s32.totalorder %s22, 3
      %p57 = por %p55, %p56
      %p59 = scmp.ne.s32.totalorder %s42, %s58
      %p60 = scmp.eq.s32.totalorder %s22, 0
      %p61 = por %p59, %p60
      %s63 = sadd.s32 %s62, 1
      %p66 = scmp.eq.s32.totalorder %s16, 3
      %p67 = scmp.ne.s32.totalorder %s62, %s64
      %p68 = scmp.eq.s32.totalorder %s16, 0
      %p69 = por %p67, %p68
      %p70 = scmp.ne.s32.totalorder %s62, %s64
      %p71 = scmp.eq.s32.totalorder %s21, 3
      %p72 = por %p70, %p71
      %p73 = scmp.ne.s32.totalorder %s64, %s65
      %p74 = scmp.eq.s32.totalorder %s21, 0
      %p75 = por %p73, %p74
      %p76 = scmp.ne.s32.totalorder %s64, %s65
      %p77 = scmp.eq.s32.totalorder %s22, 3
      %p78 = por %p76, %p77
      %p80 = scmp.ne.s32.totalorder %s65, %s79
      %p81 = scmp.eq.s32.totalorder %s22, 0
      %p82 = por %p80, %p81
      %s84 = sadd.s32 %s83, 1
      %p87 = scmp.eq.s32.totalorder %s16, 3
      %p88 = scmp.ne.s32.totalorder %s83, %s85
      %p89 = scmp.eq.s32.totalorder %s16, 0
      %p90 = por %p88, %p89
      %p91 = scmp.ne.s32.totalorder %s83, %s85
      %p92 = scmp.eq.s32.totalorder %s21, 3
      %p93 = por %p91, %p92
      %p94 = scmp.ne.s32.totalorder %s85, %s86
      %p95 = scmp.eq.s32.totalorder %s21, 0
      %p96 = por %p94, %p95
      %p97 = scmp.ne.s32.totalorder %s85, %s86
      %p98 = scmp.eq.s32.totalorder %s22, 3
      %p99 = por %p97, %p98
      %p101 = scmp.ne.s32.totalorder %s86, %s100
      %p102 = scmp.eq.s32.totalorder %s22, 0
      %p103 = por %p101, %p102
      %s105 = sadd.s32 %s104, 1
      %p108 = scmp.eq.s32.totalorder %s16, 3
      %p109 = scmp.ne.s32.totalorder %s104, %s106
      %p110 = scmp.eq.s32.totalorder %s16, 0
      %p111 = por %p109, %p110
      %p112 = scmp.ne.s32.totalorder %s104, %s106
      %p113 = scmp.eq.s32.totalorder %s21, 3
      %p114 = por %p112, %p113
      %p115 = scmp.ne.s32.totalorder %s106, %s107
      %p116 = scmp.eq.s32.totalorder %s21, 0
      %p117 = por %p115, %p116
      %p118 = scmp.ne.s32.totalorder %s106, %s107
      %p119 = scmp.eq.s32.totalorder %s22, 3
      %p120 = por %p118, %p119
      %p122 = scmp.ne.s32.totalorder %s107, %s121
      %p123 = scmp.eq.s32.totalorder %s22, 0
      %p124 = por %p122, %p123
      %s126 = sadd.s32 %s125, 1
      %p129 = scmp.eq.s32.totalorder %s16, 3
      %p130 = scmp.ne.s32.totalorder %s125, %s127
      %p131 = scmp.eq.s32.totalorder %s16, 0
      %p132 = por %p130, %p131
      %p133 = scmp.ne.s32.totalorder %s125, %s127
      %p134 = scmp.eq.s32.totalorder %s21, 3
      %p135 = por %p133, %p134
      %p136 = scmp.ne.s32.totalorder %s127, %s128
      %p137 = scmp.eq.s32.totalorder %s21, 0
      %p138 = por %p136, %p137
      %p139 = scmp.ne.s32.totalorder %s127, %s128
      %p140 = scmp.eq.s32.totalorder %s22, 3
      %p141 = por %p139, %p140
      %p143 = scmp.ne.s32.totalorder %s128, %s142
      %p144 = scmp.eq.s32.totalorder %s22, 0
      %p145 = por %p143, %p144
      %s146 = ssub.s32 %s23, %s35
      %s147 = ssub.s32 %s24, %s31
      %s148 = sor.u32 %s146, %s147
      %p149 = scmp.eq.s32.totalorder %s148, 0
      %s151 = sadd.s32 %s150, 1
      %s152 = scalar_select %p149, %s150, %s151
      %p155 = pneg %p149
      %p156 = scmp.eq.s32.totalorder %s16, 3
      %p157 = por %p155, %p156
      %p158 = scmp.ne.s32.totalorder %s150, %s153
      %p159 = scmp.eq.s32.totalorder %s16, 0
      %p160 = por %p158, %p159
      %p161 = scmp.ne.s32.totalorder %s150, %s153
      %p162 = scmp.eq.s32.totalorder %s21, 3
      %p163 = por %p161, %p162
      %p164 = scmp.ne.s32.totalorder %s153, %s154
      %p165 = scmp.eq.s32.totalorder %s21, 0
      %p166 = por %p164, %p165
      %p167 = scmp.ne.s32.totalorder %s153, %s154
      %p168 = scmp.eq.s32.totalorder %s22, 3
      %p169 = por %p167, %p168
      %p171 = scmp.ne.s32.totalorder %s154, %s170
      %p172 = scmp.eq.s32.totalorder %s22, 0
      %p173 = por %p171, %p172
      %p174 = scmp.le.s32.totalorder 1, %s16
      %p175 = scmp.lt.s32.totalorder %s16, 5
      %p176 = pnand %p174, %p175
      %p177 = pneg %p176
      // Predicated region
      $region9: #{tpu_custom_call.1} parent=5 // pred_check
        _
      $region10: #{tpu_custom_call.1} parent=5 // pred_check_branch
        %179 = sbr.rel (%p176) target = $region12
      $region11: #{tpu_custom_call.1} parent=5 // pred_region
        %s180 = ssub.s32 %s16, 1
        // Predicated region
        $region13: #{tpu_custom_call.1} parent=11 // pred_check
          %p181 = pneg %p75
        $region14: #{tpu_custom_call.1} parent=11 // pred_check_branch
          %183 = sbr.rel (%p181) target = $region16
        $region15: #{tpu_custom_call.1} parent=11 // pred_region
          %s185 = ssub.s32 128, 128
          %186 = vsyncadd [#allocation3], %s185
          %s187 = sshll.u32 [#allocation2], 4
          %s188 = int_to_ptr.vmem [resolvable:$true] %s187
          %193 = dma.hbm_to_vmem [thread:$0]  %s1, 128, %s188, [#allocation3], 64, 64, 4
        $region16: #{tpu_custom_call.1} parent=11 // pred_fallthru
          _
        // Predicated region
        $region17: #{tpu_custom_call.1} parent=11 // pred_check
          %p194 = pneg %p96
        $region18: #{tpu_custom_call.1} parent=11 // pred_check_branch
          %196 = sbr.rel (%p194) target = $region20
        $region19: #{tpu_custom_call.1} parent=11 // pred_region
          _
        $region20: #{tpu_custom_call.1} parent=11 // pred_fallthru
          _
        // Predicated region
        $region21: #{tpu_custom_call.1} parent=11 // pred_check
          %p197 = pneg %p117
        $region22: #{tpu_custom_call.1} parent=11 // pred_check_branch
          %199 = sbr.rel (%p197) target = $region24
        $region23: #{tpu_custom_call.1} parent=11 // pred_region
          %s201 = ssub.s32 128, 128
          %202 = vsyncadd [#allocation6], %s201
          %s203 = sshll.u32 [#allocation5], 4
          %s204 = int_to_ptr.vmem [resolvable:$true] %s203
          %209 = dma.hbm_to_vmem [thread:$0]  %s3, 128, %s204, [#allocation6], 64, 64, 4
        $region24: #{tpu_custom_call.1} parent=11 // pred_fallthru
          _
        // Predicated region
        $region25: #{tpu_custom_call.1} parent=11 // pred_check
          %p210 = pneg %p138
        $region26: #{tpu_custom_call.1} parent=11 // pred_check_branch
          %212 = sbr.rel (%p210) target = $region28
        $region27: #{tpu_custom_call.1} parent=11 // pred_region
          _
        $region28: #{tpu_custom_call.1} parent=11 // pred_fallthru
          _
      $region12: #{tpu_custom_call.1} parent=5 // pred_fallthru
        _
      %p213 = scmp.lt.s32.totalorder %s16, 4
      // Predicated region
      $region29: #{tpu_custom_call.1} parent=5 // pred_check
        %p214 = pneg %p213
      $region30: #{tpu_custom_call.1} parent=5 // pred_check_branch
        %216 = sbr.rel (%p214) target = $region32
      $region31: #{tpu_custom_call.1} parent=5 // pred_region
        // Predicated region
        $region33: #{tpu_custom_call.1} parent=31 // pred_check
          %p217 = pneg %p48
        $region34: #{tpu_custom_call.1} parent=31 // pred_check_branch
          %219 = sbr.rel (%p217) target = $region36
        $region35: #{tpu_custom_call.1} parent=31 // pred_region
          %p220 = scmp.lt.s32.totalorder %s23, 1
          %s221 = scalar_select %p220, %s23, 1
          %s222 = smul.addr %s221, 4
          %s223 = smul.addr %s222, 4
          %s224 = scalar_lea.vmem %s0, %s223
        $region36: #{tpu_custom_call.1} parent=31 // pred_fallthru
          _
      $region32: #{tpu_custom_call.1} parent=5 // pred_fallthru
        _
      %p225 = scmp.le.s32.totalorder 1, %s16
      %p226 = scmp.lt.s32.totalorder %s16, 5
      %p227 = pnand %p225, %p226
      %p228 = pneg %p227
      // Predicated region
      $region37: #{tpu_custom_call.1} parent=5 // pred_check
        _
      $region38: #{tpu_custom_call.1} parent=5 // pred_check_branch
        %230 = sbr.rel (%p227) target = $region40
      $region39: #{tpu_custom_call.1} parent=5 // pred_region
        %s231 = ssub.s32 %s16, 1
        // Predicated region
        $region41: #{tpu_custom_call.1} parent=39 // pred_check
          %p232 = pneg %p75
        $region42: #{tpu_custom_call.1} parent=39 // pred_check_branch
          %234 = sbr.rel (%p232) target = $region44
        $region43: #{tpu_custom_call.1} parent=39 // pred_region
          %235 = dma.done [#allocation3], 128
        $region44: #{tpu_custom_call.1} parent=39 // pred_fallthru
          _
        // Predicated region
        $region45: #{tpu_custom_call.1} parent=39 // pred_check
          %p236 = pneg %p117
        $region46: #{tpu_custom_call.1} parent=39 // pred_check_branch
          %238 = sbr.rel (%p236) target = $region48
        $region47: #{tpu_custom_call.1} parent=39 // pred_region
          %239 = dma.done [#allocation6], 128
        $region48: #{tpu_custom_call.1} parent=39 // pred_fallthru
          _
        %p240 = scmp.lt.s32.totalorder %s25, 1
        %s241 = scalar_select %p240, %s25, 1
        %s242 = smul.addr %s241, 4
        %s243 = smul.addr %s242, 4
        %s244 = scalar_lea.vmem %s0, %s243
        %p245 = pneg %p54
        %p246 = pneg %p51
        %p247 = pneg %p75
        %p248 = pneg %p72
        %p249 = pneg %p96
        %p250 = pneg %p93
        %p251 = pneg %p117
        %p252 = pneg %p114
        %p253 = pneg %p138
        %p254 = pneg %p135
        %p255 = pneg %p166
        %p256 = pneg %p163
        %s257 = sand.u32 %s153, 1
        %s258 = scalar_lea.sflag [#allocation4], %s257
        %s259 = sand.u32 %s153, 1
        %s260 = smul.addr %s259, 256
        %s261 = scalar_lea.vmem [#allocation7], %s260
        %p262 = scmp.lt.s32.totalorder %s25, 1
        %s263 = scalar_select %p262, %s25, 1
        %s264 = smul.addr %s263, 4
        %s265 = smul.addr %s264, 4
        %s266 = scalar_lea.vmem %s0, %s265
        %s268 = smul.u32 %s26, 128
        %v269 = vld [vmem:[#allocation5] sm:$0xf]
        %v270 = vld [vmem:[#allocation5 + $0x4] sm:$0xf]
        %v271 = vld [vmem:[%s266] sm:$0xff]
        %v272 = vld [vmem:[%s266 + $0x8] sm:$0xff]
        %v273 = vld [vmem:[%s4] sm:$0xff]
        %v274 = vld [vmem:[%s4 + $0x8] sm:$0xff]
        %276 = vset.pattern.permute.xlu0 0
        %277 = vperm.xlu0 %276, %v273
        %v278 = vpop.permute.xlu0 %277
        %281 = vset.pattern.permute.xlu0 0
        %282 = vperm.xlu0 %281, %v274
        %v283 = vpop.permute.xlu0 %282
        %v287 = vunpack.c.l.b16 %v269
        %v288 = vunpack.c.l.b16 %v270
        %v289 = vpack.c.b16 %v288, %v287
        %v292 = vunpack.c.l.b16 %v271
        %v293 = vunpack.c.h.b16 %v271
        %v294 = vunpack.c.l.b16 %v272
        %v295 = vunpack.c.h.b16 %v272
        %v296 = vpack.c.b16 %v294, %v292
        %v297 = vpack.c.b16 %v295, %v293
        %vm300 = vcmask 130048
        %v302 = vsel %vm300, %v289, 0
        %304 = vmatprep.subr.bf16.mxu0 0
        %305 = vmatpush1.bf16.msra.mxu0 0
        %306 = vmatprep.subr.bf16.mxu0 0
        %307 = vmatpush1.bf16.msra.mxu0 0
        %308 = vmatprep.subr.bf16.mxu0 0
        %309 = vmatpush1.bf16.msra.mxu0 0
        %310 = vmatprep.subr.bf16.mxu0 0
        %311 = vmatpush1.bf16.msra.mxu0 0
        %312 = vmatprep.subr.bf16.mxu0 0
        %313 = vmatpush1.bf16.msra.mxu0 0
        %314 = vmatprep.subr.bf16.mxu0 0
        %315 = vmatpush1.bf16.msra.mxu0 0
        %316 = vmatprep.subr.bf16.mxu0 0
        %317 = vmatpush1.bf16.msra.mxu0 0
        %318 = vmatprep.subr.bf16.mxu0 %v297
        %319 = vmatpush1.bf16.msra.mxu0 %v296
        %320 = vmatprep.subr.bf16.mxu0 0
        %321 = vmatpush2.bf16.msra.mxu0 0
        %322 = vmatprep.subr.bf16.mxu0 0
        %323 = vmatpush2.bf16.msra.mxu0 0
        %324 = vmatprep.subr.bf16.mxu0 0
        %325 = vmatpush2.bf16.msra.mxu0 0
        %326 = vmatprep.subr.bf16.mxu0 0
        %327 = vmatpush2.bf16.msra.mxu0 0
        %328 = vmatprep.subr.bf16.mxu0 0
        %329 = vmatpush2.bf16.msra.mxu0 0
        %330 = vmatprep.subr.bf16.mxu0 0
        %331 = vmatpush2.bf16.msra.mxu0 0
        %332 = vmatprep.subr.bf16.mxu0 0
        %333 = vmatpush2.bf16.msra.mxu0 0
        %334 = vmatprep.subr.bf16.mxu0 0
        %335 = vmatpush2.bf16.msra.mxu0 0
        %336 = vmatprep.mubr.bf16.mxu0 0
        %337 = vmatmul.mubr.bf16.gmra.mxu0 %v302
        %v338 = vpop.f32.mrf.mxu0
        %v339 = vadd.f32 %v278, %v338
        %v340 = vpop.f32.mrf.mxu0
        %v341 = vadd.f32 %v278, %v340
        %v342 = vpop.f32.mrf.mxu0
        %v343 = vadd.f32 %v283, %v342
        %v344 = vpop.f32.mrf.mxu0
        %v345 = vadd.f32 %v283, %v344
        %346 = vdwg.mxu0
        %s347 = sshra.s32 %s268, 7
        %s348 = sand.u32 %s268, 127
        %s349 = smul.addr %s347, 4
        %s350 = scalar_lea.vmem %s266, %s349
        %v351 = vld [vmem:[%s350] sm:$0xf]
        %v352 = vld [vmem:[%s350 + $0x8] sm:$0xf]
        %v353 = vld [vmem:[#allocation2] sm:$0xf]
        %v354 = vld [vmem:[#allocation2 + $0x4] sm:$0xf]
        %v355 = vld [vmem:[%s2] sm:$0xff]
        %v356 = vld [vmem:[%s2 + $0x8] sm:$0xff]
        %358 = vset.pattern.permute.xlu0 0
        %359 = vperm.xlu0 %358, %v355
        %v360 = vpop.permute.xlu0 %359
        %363 = vset.pattern.permute.xlu0 0
        %364 = vperm.xlu0 %363, %v356
        %v365 = vpop.permute.xlu0 %364
        %v369 = vunpack.c.l.b16 %v353
        %v370 = vunpack.c.l.b16 %v354
        %v371 = vpack.c.b16 %v370, %v369
        %v374 = vunpack.c.l.b16 %v351
        %v375 = vunpack.c.l.b16 %v352
        %v376 = vpack.c.b16 %v375, %v374
        %v379 = vsel %vm300, %v371, 0
        %381 = vmatprep.subr.bf16.mxu0 0
        %382 = vmatpush1.bf16.msra.mxu0 0
        %383 = vmatprep.subr.bf16.mxu0 0
        %384 = vmatpush1.bf16.msra.mxu0 0
        %385 = vmatprep.subr.bf16.mxu0 0
        %386 = vmatpush1.bf16.msra.mxu0 0
        %387 = vmatprep.subr.bf16.mxu0 0
        %388 = vmatpush1.bf16.msra.mxu0 0
        %389 = vmatprep.subr.bf16.mxu0 0
        %390 = vmatpush1.bf16.msra.mxu0 0
        %391 = vmatprep.subr.bf16.mxu0 0
        %392 = vmatpush1.bf16.msra.mxu0 0
        %393 = vmatprep.subr.bf16.mxu0 0
        %394 = vmatpush1.bf16.msra.mxu0 0
        %395 = vmatprep.subr.bf16.mxu0 0
        %396 = vmatpush1.bf16.msra.mxu0 %v376
        %397 = vmatprep.subr.bf16.mxu0 0
        %398 = vmatpush2.bf16.msra.mxu0 0
        %399 = vmatprep.subr.bf16.mxu0 0
        %400 = vmatpush2.bf16.msra.mxu0 0
        %401 = vmatprep.subr.bf16.mxu0 0
        %402 = vmatpush2.bf16.msra.mxu0 0
        %403 = vmatprep.subr.bf16.mxu0 0
        %404 = vmatpush2.bf16.msra.mxu0 0
        %405 = vmatprep.subr.bf16.mxu0 0
        %406 = vmatpush2.bf16.msra.mxu0 0
        %407 = vmatprep.subr.bf16.mxu0 0
        %408 = vmatpush2.bf16.msra.mxu0 0
        %409 = vmatprep.subr.bf16.mxu0 0
        %410 = vmatpush2.bf16.msra.mxu0 0
        %411 = vmatprep.subr.bf16.mxu0 0
        %412 = vmatpush2.bf16.msra.mxu0 0
        %413 = vmatprep.mubr.bf16.mxu0 0
        %414 = vmatmul.mubr.bf16.gmra.mxu0 %v379
        %v415 = vpop.f32.mrf.mxu0
        %v416 = vadd.f32 %v360, %v415
        %v417 = vpop.f32.mrf.mxu0
        %v418 = vpop.f32.mrf.mxu0
        %v419 = vadd.f32 %v365, %v418
        %v420 = vpop.f32.mrf.mxu0
        %421 = vdwg.mxu0
        %v422 = vpack.c.bf16 %v343, %v339
        %v423 = vpack.c.bf16 %v345, %v341
        %v424 = vpack.c.bf16 %v419, %v416
        %425 = vxpose.xlu0.c.b16.start [1/8] %v422, 128
        %426 = vxpose.xlu0.c.b16.cont [2/8] 0, 128
        %427 = vxpose.xlu0.c.b16.cont [3/8] 0, 128
        %428 = vxpose.xlu0.c.b16.cont [4/8] 0, 128
        %429 = vxpose.xlu0.c.b16.cont [5/8] 0, 128
        %430 = vxpose.xlu0.c.b16.cont [6/8] 0, 128
        %431 = vxpose.xlu0.c.b16.cont [7/8] 0, 128
        %432 = vxpose.xlu0.c.b16.end [8/8] 0, 128
        %v433 = vpop.trf.xlu0
        %v434 = vpop.trf.xlu0
        %v435 = vpop.trf.xlu0
        %v436 = vpop.trf.xlu0
        %v437 = vpop.trf.xlu0
        %v438 = vpop.trf.xlu0
        %v439 = vpop.trf.xlu0
        %v440 = vpop.trf.xlu0
        %441 = vxpose.xlu0.c.b16.start [1/8] %v423, 128
        %442 = vxpose.xlu0.c.b16.cont [2/8] 0, 128
        %443 = vxpose.xlu0.c.b16.cont [3/8] 0, 128
        %444 = vxpose.xlu0.c.b16.cont [4/8] 0, 128
        %445 = vxpose.xlu0.c.b16.cont [5/8] 0, 128
        %446 = vxpose.xlu0.c.b16.cont [6/8] 0, 128
        %447 = vxpose.xlu0.c.b16.cont [7/8] 0, 128
        %448 = vxpose.xlu0.c.b16.end [8/8] 0, 128
        %v449 = vpop.trf.xlu0
        %v450 = vpop.trf.xlu0
        %v451 = vpop.trf.xlu0
        %v452 = vpop.trf.xlu0
        %v453 = vpop.trf.xlu0
        %v454 = vpop.trf.xlu0
        %v455 = vpop.trf.xlu0
        %v456 = vpop.trf.xlu0
        %v458 = vsel %vm300, %v433, 0
        %v461 = vsel %vm300, %v434, 0
        %v464 = vsel %vm300, %v435, 0
        %v467 = vsel %vm300, %v436, 0
        %v470 = vsel %vm300, %v437, 0
        %v473 = vsel %vm300, %v438, 0
        %v476 = vsel %vm300, %v439, 0
        %v479 = vsel %vm300, %v440, 0
        %v482 = vsel %vm300, %v449, 0
        %v485 = vsel %vm300, %v450, 0
        %v488 = vsel %vm300, %v451, 0
        %v491 = vsel %vm300, %v452, 0
        %v494 = vsel %vm300, %v453, 0
        %v497 = vsel %vm300, %v454, 0
        %v500 = vsel %vm300, %v455, 0
        %v503 = vsel %vm300, %v456, 0
        %505 = vmatprep.subr.bf16.mxu0 0
        %506 = vmatpush1.bf16.msra.mxu0 0
        %507 = vmatprep.subr.bf16.mxu0 0
        %508 = vmatpush1.bf16.msra.mxu0 0
        %509 = vmatprep.subr.bf16.mxu0 0
        %510 = vmatpush1.bf16.msra.mxu0 0
        %511 = vmatprep.subr.bf16.mxu0 0
        %512 = vmatpush1.bf16.msra.mxu0 0
        %513 = vmatprep.subr.bf16.mxu0 0
        %514 = vmatpush1.bf16.msra.mxu0 0
        %515 = vmatprep.subr.bf16.mxu0 0
        %516 = vmatpush1.bf16.msra.mxu0 0
        %517 = vmatprep.subr.bf16.mxu0 0
        %518 = vmatpush1.bf16.msra.mxu0 0
        %519 = vmatprep.subr.bf16.mxu0 0
        %520 = vmatpush1.bf16.msra.mxu0 %v424
        %521 = vmatprep.subr.bf16.mxu0 0
        %522 = vmatpush2.bf16.msra.mxu0 0
        %523 = vmatprep.subr.bf16.mxu0 0
        %524 = vmatpush2.bf16.msra.mxu0 0
        %525 = vmatprep.subr.bf16.mxu0 0
        %526 = vmatpush2.bf16.msra.mxu0 0
        %527 = vmatprep.subr.bf16.mxu0 0
        %528 = vmatpush2.bf16.msra.mxu0 0
        %529 = vmatprep.subr.bf16.mxu0 0
        %530 = vmatpush2.bf16.msra.mxu0 0
        %531 = vmatprep.subr.bf16.mxu0 0
        %532 = vmatpush2.bf16.msra.mxu0 0
        %533 = vmatprep.subr.bf16.mxu0 0
        %534 = vmatpush2.bf16.msra.mxu0 0
        %535 = vmatprep.subr.bf16.mxu0 0
        %536 = vmatpush2.bf16.msra.mxu0 0
        %537 = vmatprep.mubr.bf16.mxu0 0
        %538 = vmatmul.mubr.bf16.gmra.mxu0 %v458
        %v539 = vpop.f32.mrf.mxu0
        %v540 = vadd.f32 0.0, %v539
        %v541 = vpop.f32.mrf.mxu0
        %v542 = vpop.f32.mrf.mxu0
        %v543 = vadd.f32 0.0, %v542
        %v544 = vpop.f32.mrf.mxu0
        %545 = vmatprep.mubr.bf16.mxu0 0
        %546 = vmatmul.mubr.bf16.gmra.mxu0 %v461
        %v547 = vpop.f32.mrf.mxu0
        %v548 = vadd.f32 0.0, %v547
        %v549 = vpop.f32.mrf.mxu0
        %v550 = vpop.f32.mrf.mxu0
        %v551 = vadd.f32 0.0, %v550
        %v552 = vpop.f32.mrf.mxu0
        %553 = vmatprep.mubr.bf16.mxu0 0
        %554 = vmatmul.mubr.bf16.gmra.mxu0 %v464
        %v555 = vpop.f32.mrf.mxu0
        %v556 = vadd.f32 0.0, %v555
        %v557 = vpop.f32.mrf.mxu0
        %v558 = vpop.f32.mrf.mxu0
        %v559 = vadd.f32 0.0, %v558
        %v560 = vpop.f32.mrf.mxu0
        %561 = vmatprep.mubr.bf16.mxu0 0
        %562 = vmatmul.mubr.bf16.gmra.mxu0 %v467
        %v563 = vpop.f32.mrf.mxu0
        %v564 = vadd.f32 0.0, %v563
        %v565 = vpop.f32.mrf.mxu0
        %v566 = vpop.f32.mrf.mxu0
        %v567 = vadd.f32 0.0, %v566
        %v568 = vpop.f32.mrf.mxu0
        %569 = vmatprep.mubr.bf16.mxu0 0
        %570 = vmatmul.mubr.bf16.gmra.mxu0 %v470
        %v571 = vpop.f32.mrf.mxu0
        %v572 = vadd.f32 0.0, %v571
        %v573 = vpop.f32.mrf.mxu0
        %v574 = vpop.f32.mrf.mxu0
        %v575 = vadd.f32 0.0, %v574
        %v576 = vpop.f32.mrf.mxu0
        %577 = vmatprep.mubr.bf16.mxu0 0
        %578 = vmatmul.mubr.bf16.gmra.mxu0 %v473
        %v579 = vpop.f32.mrf.mxu0
        %v580 = vadd.f32 0.0, %v579
        %v581 = vpop.f32.mrf.mxu0
        %v582 = vpop.f32.mrf.mxu0
        %v583 = vadd.f32 0.0, %v582
        %v584 = vpop.f32.mrf.mxu0
        %585 = vmatprep.mubr.bf16.mxu0 0
        %586 = vmatmul.mubr.bf16.gmra.mxu0 %v476
        %v587 = vpop.f32.mrf.mxu0
        %v588 = vadd.f32 0.0, %v587
        %v589 = vpop.f32.mrf.mxu0
        %v590 = vpop.f32.mrf.mxu0
        %v591 = vadd.f32 0.0, %v590
        %v592 = vpop.f32.mrf.mxu0
        %593 = vmatprep.mubr.bf16.mxu0 0
        %594 = vmatmul.mubr.bf16.gmra.mxu0 %v479
        %v595 = vpop.f32.mrf.mxu0
        %v596 = vadd.f32 0.0, %v595
        %v597 = vpop.f32.mrf.mxu0
        %v598 = vpop.f32.mrf.mxu0
        %v599 = vadd.f32 0.0, %v598
        %v600 = vpop.f32.mrf.mxu0
        %601 = vmatprep.mubr.bf16.mxu0 0
        %602 = vmatmul.mubr.bf16.gmra.mxu0 %v482
        %v603 = vpop.f32.mrf.mxu0
        %v604 = vadd.f32 0.0, %v603
        %v605 = vpop.f32.mrf.mxu0
        %v606 = vpop.f32.mrf.mxu0
        %v607 = vadd.f32 0.0, %v606
        %v608 = vpop.f32.mrf.mxu0
        %609 = vmatprep.mubr.bf16.mxu0 0
        %610 = vmatmul.mubr.bf16.gmra.mxu0 %v485
        %v611 = vpop.f32.mrf.mxu0
        %v612 = vadd.f32 0.0, %v611
        %v613 = vpop.f32.mrf.mxu0
        %v614 = vpop.f32.mrf.mxu0
        %v615 = vadd.f32 0.0, %v614
        %v616 = vpop.f32.mrf.mxu0
        %617 = vmatprep.mubr.bf16.mxu0 0
        %618 = vmatmul.mubr.bf16.gmra.mxu0 %v488
        %v619 = vpop.f32.mrf.mxu0
        %v620 = vadd.f32 0.0, %v619
        %v621 = vpop.f32.mrf.mxu0
        %v622 = vpop.f32.mrf.mxu0
        %v623 = vadd.f32 0.0, %v622
        %v624 = vpop.f32.mrf.mxu0
        %625 = vmatprep.mubr.bf16.mxu0 0
        %626 = vmatmul.mubr.bf16.gmra.mxu0 %v491
        %v627 = vpop.f32.mrf.mxu0
        %v628 = vadd.f32 0.0, %v627
        %v629 = vpop.f32.mrf.mxu0
        %v630 = vpop.f32.mrf.mxu0
        %v631 = vadd.f32 0.0, %v630
        %v632 = vpop.f32.mrf.mxu0
        %633 = vmatprep.mubr.bf16.mxu0 0
        %634 = vmatmul.mubr.bf16.gmra.mxu0 %v494
        %v635 = vpop.f32.mrf.mxu0
        %v636 = vadd.f32 0.0, %v635
        %v637 = vpop.f32.mrf.mxu0
        %v638 = vpop.f32.mrf.mxu0
        %v639 = vadd.f32 0.0, %v638
        %v640 = vpop.f32.mrf.mxu0
        %641 = vmatprep.mubr.bf16.mxu0 0
        %642 = vmatmul.mubr.bf16.gmra.mxu0 %v497
        %v643 = vpop.f32.mrf.mxu0
        %v644 = vadd.f32 0.0, %v643
        %v645 = vpop.f32.mrf.mxu0
        %v646 = vpop.f32.mrf.mxu0
        %v647 = vadd.f32 0.0, %v646
        %v648 = vpop.f32.mrf.mxu0
        %649 = vmatprep.mubr.bf16.mxu0 0
        %650 = vmatmul.mubr.bf16.gmra.mxu0 %v500
        %v651 = vpop.f32.mrf.mxu0
        %v652 = vadd.f32 0.0, %v651
        %v653 = vpop.f32.mrf.mxu0
        %v654 = vpop.f32.mrf.mxu0
        %v655 = vadd.f32 0.0, %v654
        %v656 = vpop.f32.mrf.mxu0
        %657 = vmatprep.mubr.bf16.mxu0 0
        %658 = vmatmul.mubr.bf16.gmra.mxu0 %v503
        %v659 = vpop.f32.mrf.mxu0
        %v660 = vadd.f32 0.0, %v659
        %v661 = vpop.f32.mrf.mxu0
        %v662 = vpop.f32.mrf.mxu0
        %v663 = vadd.f32 0.0, %v662
        %v664 = vpop.f32.mrf.mxu0
        %665 = vdwg.mxu0
        %v666 = vmax.f32 %v540, %v556
        %v667 = vmax.f32 %v543, %v559
        %v668 = vmax.f32 %v548, %v564
        %v669 = vmax.f32 %v551, %v567
        %v670 = vmax.f32 %v666, %v572
        %v671 = vmax.f32 %v667, %v575
        %v672 = vmax.f32 %v668, %v580
        %v673 = vmax.f32 %v669, %v583
        %v674 = vmax.f32 %v670, %v588
        %v675 = vmax.f32 %v671, %v591
        %v676 = vmax.f32 %v672, %v596
        %v677 = vmax.f32 %v673, %v599
        %v678 = vmax.f32 %v674, %v604
        %v679 = vmax.f32 %v675, %v607
        %v680 = vmax.f32 %v676, %v612
        %v681 = vmax.f32 %v677, %v615
        %v682 = vmax.f32 %v678, %v620
        %v683 = vmax.f32 %v679, %v623
        %v684 = vmax.f32 %v680, %v628
        %v685 = vmax.f32 %v681, %v631
        %v686 = vmax.f32 %v682, %v636
        %v687 = vmax.f32 %v683, %v639
        %v688 = vmax.f32 %v684, %v644
        %v689 = vmax.f32 %v685, %v647
        %v690 = vmax.f32 %v686, %v652
        %v691 = vmax.f32 %v687, %v655
        %v692 = vmax.f32 %v688, %v660
        %v693 = vmax.f32 %v689, %v663
        %v694 = vmax.f32 %v690, %v691
        %v695 = vmax.f32 %v692, %v693
        %v696 = vmax.f32 %v694, %v695
        %v697 = vrot.slane %v696, 4
        %v698 = vmax.f32 %v696, %v697
        %v699 = vrot.slane %v698, 2
        %v700 = vmax.f32 %v698, %v699
        %v701 = vrot.slane %v700, 1
        %v702 = vmax.f32 %v700, %v701
        %v703 = vsub.f32 %v540, %v702
        %v704 = vsub.f32 %v543, %v702
        %v705 = vsub.f32 %v548, %v702
        %v706 = vsub.f32 %v551, %v702
        %v707 = vsub.f32 %v556, %v702
        %v708 = vsub.f32 %v559, %v702
        %v709 = vsub.f32 %v564, %v702
        %v710 = vsub.f32 %v567, %v702
        %v711 = vsub.f32 %v572, %v702
        %v712 = vsub.f32 %v575, %v702
        %v713 = vsub.f32 %v580, %v702
        %v714 = vsub.f32 %v583, %v702
        %v715 = vsub.f32 %v588, %v702
        %v716 = vsub.f32 %v591, %v702
        %v717 = vsub.f32 %v596, %v702
        %v718 = vsub.f32 %v599, %v702
        %v719 = vsub.f32 %v604, %v702
        %v720 = vsub.f32 %v607, %v702
        %v721 = vsub.f32 %v612, %v702
        %v722 = vsub.f32 %v615, %v702
        %v723 = vsub.f32 %v620, %v702
        %v724 = vsub.f32 %v623, %v702
        %v725 = vsub.f32 %v628, %v702
        %v726 = vsub.f32 %v631, %v702
        %v727 = vsub.f32 %v636, %v702
        %v728 = vsub.f32 %v639, %v702
        %v729 = vsub.f32 %v644, %v702
        %v730 = vsub.f32 %v647, %v702
        %v731 = vsub.f32 %v652, %v702
        %v732 = vsub.f32 %v655, %v702
        %v733 = vsub.f32 %v660, %v702
        %v734 = vsub.f32 %v663, %v702
        %v735 = vmul.f32 %v703, 1.442695
        %v736 = vpow.pop %v735
        %v737 = vmul.f32 %v704, 1.442695
        %v738 = vpow.pop %v737
        %v739 = vmul.f32 %v705, 1.442695
        %v740 = vpow.pop %v739
        %v741 = vmul.f32 %v706, 1.442695
        %v742 = vpow.pop %v741
        %v743 = vmul.f32 %v707, 1.442695
        %v744 = vpow.pop %v743
        %v745 = vmul.f32 %v708, 1.442695
        %v746 = vpow.pop %v745
        %v747 = vmul.f32 %v709, 1.442695
        %v748 = vpow.pop %v747
        %v749 = vmul.f32 %v710, 1.442695
        %v750 = vpow.pop %v749
        %v751 = vmul.f32 %v711, 1.442695
        %v752 = vpow.pop %v751
        %v753 = vmul.f32 %v712, 1.442695
        %v754 = vpow.pop %v753
        %v755 = vmul.f32 %v713, 1.442695
        %v756 = vpow.pop %v755
        %v757 = vmul.f32 %v714, 1.442695
        %v758 = vpow.pop %v757
        %v759 = vmul.f32 %v715, 1.442695
        %v760 = vpow.pop %v759
        %v761 = vmul.f32 %v716, 1.442695
        %v762 = vpow.pop %v761
        %v763 = vmul.f32 %v717, 1.442695
        %v764 = vpow.pop %v763
        %v765 = vmul.f32 %v718, 1.442695
        %v766 = vpow.pop %v765
        %v767 = vmul.f32 %v719, 1.442695
        %v768 = vpow.pop %v767
        %v769 = vmul.f32 %v720, 1.442695
        %v770 = vpow.pop %v769
        %v771 = vmul.f32 %v721, 1.442695
        %v772 = vpow.pop %v771
        %v773 = vmul.f32 %v722, 1.442695
        %v774 = vpow.pop %v773
        %v775 = vmul.f32 %v723, 1.442695
        %v776 = vpow.pop %v775
        %v777 = vmul.f32 %v724, 1.442695
        %v778 = vpow.pop %v777
        %v779 = vmul.f32 %v725, 1.442695
        %v780 = vpow.pop %v779
        %v781 = vmul.f32 %v726, 1.442695
        %v782 = vpow.pop %v781
        %v783 = vmul.f32 %v727, 1.442695
        %v784 = vpow.pop %v783
        %v785 = vmul.f32 %v728, 1.442695
        %v786 = vpow.pop %v785
        %v787 = vmul.f32 %v729, 1.442695
        %v788 = vpow.pop %v787
        %v789 = vmul.f32 %v730, 1.442695
        %v790 = vpow.pop %v789
        %v791 = vmul.f32 %v731, 1.442695
        %v792 = vpow.pop %v791
        %v793 = vmul.f32 %v732, 1.442695
        %v794 = vpow.pop %v793
        %v795 = vmul.f32 %v733, 1.442695
        %v796 = vpow.pop %v795
        %v797 = vmul.f32 %v734, 1.442695
        %v798 = vpow.pop %v797
        %v799 = vadd.f32 %v736, %v738
        %v800 = vadd.f32 %v799, %v740
        %v801 = vadd.f32 %v800, %v742
        %v802 = vadd.f32 %v801, %v744
        %v803 = vadd.f32 %v802, %v746
        %v804 = vadd.f32 %v803, %v748
        %v805 = vadd.f32 %v804, %v750
        %v806 = vadd.f32 %v805, %v752
        %v807 = vadd.f32 %v806, %v754
        %v808 = vadd.f32 %v807, %v756
        %v809 = vadd.f32 %v808, %v758
        %v810 = vadd.f32 %v809, %v760
        %v811 = vadd.f32 %v810, %v762
        %v812 = vadd.f32 %v811, %v764
        %v813 = vadd.f32 %v812, %v766
        %v814 = vadd.f32 %v813, %v768
        %v815 = vadd.f32 %v814, %v770
        %v816 = vadd.f32 %v815, %v772
        %v817 = vadd.f32 %v816, %v774
        %v818 = vadd.f32 %v817, %v776
        %v819 = vadd.f32 %v818, %v778
        %v820 = vadd.f32 %v819, %v780
        %v821 = vadd.f32 %v820, %v782
        %v822 = vadd.f32 %v821, %v784
        %v823 = vadd.f32 %v822, %v786
        %v824 = vadd.f32 %v823, %v788
        %v825 = vadd.f32 %v824, %v790
        %v826 = vadd.f32 %v825, %v792
        %v827 = vadd.f32 %v826, %v794
        %v828 = vadd.f32 %v827, %v796
        %v829 = vadd.f32 %v828, %v798
        %v830 = vrot.slane %v829, 4
        %v831 = vadd.f32 %v829, %v830
        %v832 = vrot.slane %v831, 2
        %v833 = vadd.f32 %v831, %v832
        %v834 = vrot.slane %v833, 1
        %v835 = vadd.f32 %v833, %v834
        %v836 = vrcp.pop %v835
        %v837 = vmul.f32 %v736, %v836
        %v838 = vmul.f32 %v738, %v836
        %v839 = vmul.f32 %v740, %v836
        %v840 = vmul.f32 %v742, %v836
        %v841 = vmul.f32 %v744, %v836
        %v842 = vmul.f32 %v746, %v836
        %v843 = vmul.f32 %v748, %v836
        %v844 = vmul.f32 %v750, %v836
        %v845 = vmul.f32 %v752, %v836
        %v846 = vmul.f32 %v754, %v836
        %v847 = vmul.f32 %v756, %v836
        %v848 = vmul.f32 %v758, %v836
        %v849 = vmul.f32 %v760, %v836
        %v850 = vmul.f32 %v762, %v836
        %v851 = vmul.f32 %v764, %v836
        %v852 = vmul.f32 %v766, %v836
        %v853 = vmul.f32 %v768, %v836
        %v854 = vmul.f32 %v770, %v836
        %v855 = vmul.f32 %v772, %v836
        %v856 = vmul.f32 %v774, %v836
        %v857 = vmul.f32 %v776, %v836
        %v858 = vmul.f32 %v778, %v836
        %v859 = vmul.f32 %v780, %v836
        %v860 = vmul.f32 %v782, %v836
        %v861 = vmul.f32 %v784, %v836
        %v862 = vmul.f32 %v786, %v836
        %v863 = vmul.f32 %v788, %v836
        %v864 = vmul.f32 %v790, %v836
        %v865 = vmul.f32 %v792, %v836
        %v866 = vmul.f32 %v794, %v836
        %v867 = vmul.f32 %v796, %v836
        %v868 = vmul.f32 %v798, %v836
        %869 = vst [vmem:[%s261] sm:$0xff] %v837
        %870 = vst [vmem:[%s261 + $0x8] sm:$0xff] %v838
        %871 = vst [vmem:[%s261 + $0x10] sm:$0xff] %v839
        %872 = vst [vmem:[%s261 + $0x18] sm:$0xff] %v840
        %873 = vst [vmem:[%s261 + $0x20] sm:$0xff] %v841
        %874 = vst [vmem:[%s261 + $0x28] sm:$0xff] %v842
        %875 = vst [vmem:[%s261 + $0x30] sm:$0xff] %v843
        %876 = vst [vmem:[%s261 + $0x38] sm:$0xff] %v844
        %877 = vst [vmem:[%s261 + $0x40] sm:$0xff] %v845
        %878 = vst [vmem:[%s261 + $0x48] sm:$0xff] %v846
        %879 = vst [vmem:[%s261 + $0x50] sm:$0xff] %v847
        %880 = vst [vmem:[%s261 + $0x58] sm:$0xff] %v848
        %881 = vst [vmem:[%s261 + $0x60] sm:$0xff] %v849
        %882 = vst [vmem:[%s261 + $0x68] sm:$0xff] %v850
        %883 = vst [vmem:[%s261 + $0x70] sm:$0xff] %v851
        %884 = vst [vmem:[%s261 + $0x78] sm:$0xff] %v852
        %885 = vst [vmem:[%s261 + $0x80] sm:$0xff] %v853
        %886 = vst [vmem:[%s261 + $0x88] sm:$0xff] %v854
        %887 = vst [vmem:[%s261 + $0x90] sm:$0xff] %v855
        %888 = vst [vmem:[%s261 + $0x98] sm:$0xff] %v856
        %889 = vst [vmem:[%s261 + $0xa0] sm:$0xff] %v857
        %890 = vst [vmem:[%s261 + $0xa8] sm:$0xff] %v858
        %891 = vst [vmem:[%s261 + $0xb0] sm:$0xff] %v859
        %892 = vst [vmem:[%s261 + $0xb8] sm:$0xff] %v860
        %893 = vst [vmem:[%s261 + $0xc0] sm:$0xff] %v861
        %894 = vst [vmem:[%s261 + $0xc8] sm:$0xff] %v862
        %895 = vst [vmem:[%s261 + $0xd0] sm:$0xff] %v863
        %896 = vst [vmem:[%s261 + $0xd8] sm:$0xff] %v864
        %897 = vst [vmem:[%s261 + $0xe0] sm:$0xff] %v865
        %898 = vst [vmem:[%s261 + $0xe8] sm:$0xff] %v866
        %899 = vst [vmem:[%s261 + $0xf0] sm:$0xff] %v867
        %900 = vst [vmem:[%s261 + $0xf8] sm:$0xff] %v868
        %s901 = sand.u32 %s153, 1
        %s902 = scalar_lea.sflag [#allocation4], %s901
        %s903 = sand.u32 %s153, 1
        %s904 = smul.addr %s903, 256
        %s905 = scalar_lea.vmem [#allocation7], %s904
        // Predicated region
        $region49: #{tpu_custom_call.1} parent=39 // pred_check
          %p906 = pneg %p163
        $region50: #{tpu_custom_call.1} parent=39 // pred_check_branch
          %908 = sbr.rel (%p906) target = $region52
        $region51: #{tpu_custom_call.1} parent=39 // pred_region
          %s910 = ssub.s32 4096, 4096
          %911 = vsyncadd %s902, %s910
          %s912 = smul.addr %s25, 64
          %s913 = sadd.s32 %s26, %s912
          %s914 = smul.addr %s913, 128
          %s915 = scalar_lea.hbm %s5, %s914
          %s916 = sshll.u32 %s905, 4
          %s917 = int_to_ptr.vmem [resolvable:$true] %s916
          %922 = dma.vmem_to_hbm [thread:$0]  %s917, 4096, %s915, %s902, 128, 256, 8
        $region52: #{tpu_custom_call.1} parent=39 // pred_fallthru
          _
      $region40: #{tpu_custom_call.1} parent=5 // pred_fallthru
        _
      %p923 = scmp.le.s32.totalorder 2, %s16
      // Predicated region
      $region53: #{tpu_custom_call.1} parent=5 // pred_check
        %p924 = pneg %p923
      $region54: #{tpu_custom_call.1} parent=5 // pred_check_branch
        %926 = sbr.rel (%p924) target = $region56
      $region55: #{tpu_custom_call.1} parent=5 // pred_region
        %s927 = ssub.s32 %s16, 2
        // Predicated region
        $region57: #{tpu_custom_call.1} parent=55 // pred_check
          %p928 = pneg %p169
        $region58: #{tpu_custom_call.1} parent=55 // pred_check_branch
          %930 = sbr.rel (%p928) target = $region60
        $region59: #{tpu_custom_call.1} parent=55 // pred_region
          %s931 = sand.u32 %s154, 1
          %s932 = scalar_lea.sflag [#allocation4], %s931
          %s933 = sand.u32 %s154, 1
          %s934 = smul.addr %s933, 256
          %s935 = scalar_lea.vmem [#allocation7], %s934
          %936 = dma.done %s932, 4096
        $region60: #{tpu_custom_call.1} parent=55 // pred_fallthru
          _
      $region56: #{tpu_custom_call.1} parent=5 // pred_fallthru
        _
    $region6: #{tpu_custom_call.1} parent=1 // loop_footer
      %s20 = sadd.s32 1, %s16
    $region7: #{tpu_custom_call.1} parent=1 // loop_footer_branch
      %15 = sbr.rel target = $region3
    $region8: #{tpu_custom_call.1} parent=1 // loop_exit
      _
    %937 = vsyncpa [#allocation3], 1
    %s938 = scalar_lea.sflag [#allocation3], 1
    %939 = vsyncpa %s938, 1
    %940 = vsyncpa [#allocation6], 1
    %941 = vsyncpa [#allocation4], 1
    %s942 = scalar_lea.sflag [#allocation4], 1
    %943 = vsyncpa %s942, 1

</llo_original>
